<compile_context>
chip_gen: v5e
topology: v5e:2x2
jax: 0.10.0
libtpu: 0.0.40
codegen_flags: <defaults>
</compile_context>

<pallas_src>
import functools

import jax
import jax.numpy as jnp
from jax.experimental import pallas as pl
from jax.experimental.pallas import tpu as pltpu


def _round_up(x: int, m: int) -> int:
    return (x + m - 1) // m * m


def _actor_kernel(x_ref, w1_ref, b1_ref, w2_ref, b2_ref, o_ref):
    # First dense on the MXU (f32 accumulation) + bias + ReLU in f32 on the VPU.
    x = x_ref[...].astype(w1_ref.dtype)          # no-op in the f32 path
    h = jnp.dot(x, w1_ref[...], preferred_element_type=jnp.float32)
    h = jnp.maximum(h + b1_ref[...], 0.0)
    # Second dense + bias + sigmoid.  Cast h to the weight dtype for the MXU (bf16 path),
    # accumulate in f32, keep the epilogue elementwise math in f32 (EUP logistic).
    z = jnp.dot(h.astype(w2_ref.dtype), w2_ref[...],
                preferred_element_type=jnp.float32)
    o_ref[...] = jax.nn.sigmoid(z + b2_ref[...]).astype(o_ref.dtype)


def prepare_params(w1, b1, w2, b2, *, compute_dtype=jnp.float32):
    """Pad the hidden dim to a lane-dense 128 and cast MXU operands ONCE.

    Call this once per parameter set (e.g. per optimizer step), not per forward call.
    w1: (s_space, hidden), b1: (1, hidden)   (weights transposed vs torch.nn.Linear)
    w2: (hidden, a_space), b2: (1, a_space)
    Padded hidden columns of W1/b1 are zero (ReLU(0)=0) and the matching rows of W2 are
    zero, so padding never leaks into the output.  Biases stay f32 (f32 epilogue).
    """
    s_space, hidden = w1.shape
    a_space = w2.shape[1]
    h_pad = _round_up(hidden, 128)
    w1p = (jnp.zeros((s_space, h_pad), compute_dtype)
           .at[:, :hidden].set(w1.astype(compute_dtype)))
    b1p = jnp.zeros((1, h_pad), jnp.float32).at[:, :hidden].set(b1.astype(jnp.float32))
    w2p = (jnp.zeros((h_pad, a_space), compute_dtype)
           .at[:hidden, :].set(w2.astype(compute_dtype)))
    b2p = jnp.asarray(b2, jnp.float32).reshape(1, a_space)
    return w1p, b1p, w2p, b2p


@functools.partial(jax.jit, static_argnames=("block_b",))
def actor_forward(s, w1p, b1p, w2p, b2p, *, block_b=2048):
    """Pallas-TPU forward pass of ActorNetwork.

    s: (B, s_space) activations (f32 or bf16).
    w1p/b1p/w2p/b2p: outputs of prepare_params().
    Returns (B, a_space) float32 in (0, 1).
    """
    B, s_space = s.shape
    h_pad = w1p.shape[1]
    a_space = w2p.shape[1]
    compute_dtype = w1p.dtype
    w_itemsize = jnp.dtype(compute_dtype).itemsize

    # Row alignment: 8 sublanes for f32, 32 for packed sub-32-bit dtypes (safe for bf16).
    row_align = 8 if w_itemsize == 4 else 32

    # Batch tiling without any zero-pad copy.  Aim for at least 2 grid tiles when the batch
    # is large enough so both v7x TensorCores get work; cap the tile at block_b rows.
    if B >= 2 * row_align:
        n_tiles = max(2, pl.cdiv(B, block_b))
        tb = _round_up(pl.cdiv(B, n_tiles), row_align)
    else:
        tb = _round_up(max(B, 1), row_align)
    grid = (pl.cdiv(B, tb),)

    cost = pl.CostEstimate(
        flops=2 * B * (s_space * h_pad + h_pad * a_space),
        transcendentals=B * a_space,                           # exp in the sigmoid
        bytes_accessed=(B * s_space * s.dtype.itemsize          # stream in s
                        + B * a_space * 4                       # stream out o (narrow)
                        + (s_space * h_pad + h_pad * a_space) * w_itemsize
                        + (h_pad + a_space) * 4),               # resident weights/biases
    )

    out = pl.pallas_call(
        _actor_kernel,
        out_shape=jax.ShapeDtypeStruct((B, a_space), jnp.float32),
        grid=grid,
        in_specs=[
            pl.BlockSpec((tb, s_space), lambda i: (i, 0)),      # streamed activations
            pl.BlockSpec((s_space, h_pad), lambda i: (0, 0)),   # resident W1
            pl.BlockSpec((1, h_pad), lambda i: (0, 0)),         # resident b1
            pl.BlockSpec((h_pad, a_space), lambda i: (0, 0)),   # resident W2
            pl.BlockSpec((1, a_space), lambda i: (0, 0)),       # resident b2
        ],
        out_specs=pl.BlockSpec((tb, a_space), lambda i: (i, 0)),  # true-width output
        compiler_params=pltpu.CompilerParams(
            dimension_semantics=("parallel",)),                 # shards tiles across v7x TCs
        cost_estimate=cost,
    )(s, w1p, b1p, w2p, b2p)

    return out


def init_params(key, s_space, a_space, hidden=50):
    """Deterministic init mimicking torch.nn.Linear's U(-1/sqrt(fan_in), 1/sqrt(fan_in))."""
    k1, k2, k3, k4 = jax.random.split(key, 4)
    lim1 = 1.0 / jnp.sqrt(jnp.float32(s_space))
    lim2 = 1.0 / jnp.sqrt(jnp.float32(hidden))
    w1 = jax.random.uniform(k1, (s_space, hidden), jnp.float32, -lim1, lim1)
    b1 = jax.random.uniform(k2, (1, hidden), jnp.float32, -lim1, lim1)
    w2 = jax.random.uniform(k3, (hidden, a_space), jnp.float32, -lim2, lim2)
    b2 = jax.random.uniform(k4, (1, a_space), jnp.float32, -lim2, lim2)
    return w1, b1, w2, b2


def reference_forward(s, w1, b1, w2, b2):
    h = jnp.maximum(s @ w1 + b1, 0.0)
    return jax.nn.sigmoid(h @ w2 + b2)


if __name__ == "__main__":
    key = jax.random.PRNGKey(0)
    B, s_space, a_space = 2, 32, 8
    k_in, k_par = jax.random.split(key)
    s = jax.random.normal(k_in, (B, s_space), jnp.float32)
    w1, b1, w2, b2 = init_params(k_par, s_space, a_space)

    # Pad/cast the weights once, outside the per-call path.
    params = prepare_params(w1, b1, w2, b2)

    out = jax.block_until_ready(actor_forward(s, *params))
    ref = reference_forward(s, w1, b1, w2, b2)
    assert out.shape == (B, a_space)
    assert jnp.allclose(out, ref, atol=1e-5, rtol=1e-5), "mismatch vs reference"

    # Sanity-check a batch that exercises multiple grid tiles and the ragged last tile.
    B2 = 300
    s2 = jax.random.normal(jax.random.PRNGKey(1), (B2, s_space), jnp.float32)
    out2 = jax.block_until_ready(actor_forward(s2, *params, block_b=128))
    ref2 = reference_forward(s2, w1, b1, w2, b2)
    assert out2.shape == (B2, a_space)
    assert jnp.allclose(out2, ref2, atol=1e-5, rtol=1e-5), "mismatch vs reference (tiled)"

    print("KERNEL_OK")
</pallas_src>

<mosaic_0001>
module attributes {stable_mosaic.version = 11 : i64} {
  func.func @_actor_kernel(%arg0: i32, %arg1: memref<8x32xf32, #tpu.memory_space<vmem>>, %arg2: memref<32x128xf32, #tpu.memory_space<vmem>>, %arg3: memref<1x128xf32, #tpu.memory_space<vmem>>, %arg4: memref<128x8xf32, #tpu.memory_space<vmem>>, %arg5: memref<1x8xf32, #tpu.memory_space<vmem>>, %arg6: memref<8x8xf32, #tpu.memory_space<vmem>>) attributes {dimension_semantics = [#tpu.dimension_semantics<parallel>], iteration_bounds = array<i64: 1>, scalar_prefetch = 0 : i64, scratch_operands = 0 : i64, tpu.core_type = #tpu.core_type<tc>, window_params = [{transform_indices = @transform_0, window_bounds = array<i64: 8, 32>}, {pipeline_mode = #tpu.pipeline_mode<synchronous>, transform_indices = @transform_1, window_bounds = array<i64: 32, 128>}, {pipeline_mode = #tpu.pipeline_mode<synchronous>, transform_indices = @transform_2, window_bounds = array<i64: 1, 128>}, {pipeline_mode = #tpu.pipeline_mode<synchronous>, transform_indices = @transform_3, window_bounds = array<i64: 128, 8>}, {pipeline_mode = #tpu.pipeline_mode<synchronous>, transform_indices = @transform_4, window_bounds = array<i64: 1, 8>}, {transform_indices = @transform_5, window_bounds = array<i64: 8, 8>}]} {
    %c0 = arith.constant 0 : index
    %c0_0 = arith.constant 0 : index
    %0 = vector.load %arg1[%c0, %c0_0] : memref<8x32xf32, #tpu.memory_space<vmem>>, vector<8x32xf32>
    %c0_1 = arith.constant 0 : index
    %c0_2 = arith.constant 0 : index
    %1 = vector.load %arg2[%c0_1, %c0_2] : memref<32x128xf32, #tpu.memory_space<vmem>>, vector<32x128xf32>
    %cst = arith.constant dense<0.000000e+00> : vector<8x128xf32>
    %2 = tpu.matmul %0, %1, %cst {dimension_numbers = #tpu.dot_dimension_numbers<[1], [0], [0], [1], [0, 0, 1, 1], [], []>} : vector<8x32xf32>, vector<32x128xf32>, vector<8x128xf32> -> vector<8x128xf32>
    %c0_3 = arith.constant 0 : index
    %c0_4 = arith.constant 0 : index
    %3 = vector.load %arg3[%c0_3, %c0_4] : memref<1x128xf32, #tpu.memory_space<vmem>>, vector<1x128xf32>
    %4 = vector.broadcast %3 : vector<1x128xf32> to vector<8x128xf32>
    %5 = arith.addf %2, %4 : vector<8x128xf32>
    %cst_5 = arith.constant 0.000000e+00 : f32
    %6 = vector.broadcast %cst_5 : f32 to vector<8x128xf32>
    %7 = arith.maximumf %5, %6 : vector<8x128xf32>
    %c0_6 = arith.constant 0 : index
    %c0_7 = arith.constant 0 : index
    %8 = vector.load %arg4[%c0_6, %c0_7] : memref<128x8xf32, #tpu.memory_space<vmem>>, vector<128x8xf32>
    %cst_8 = arith.constant dense<0.000000e+00> : vector<8x8xf32>
    %9 = tpu.matmul %7, %8, %cst_8 {dimension_numbers = #tpu.dot_dimension_numbers<[1], [0], [0], [1], [0, 0, 1, 1], [], []>} : vector<8x128xf32>, vector<128x8xf32>, vector<8x8xf32> -> vector<8x8xf32>
    %c0_9 = arith.constant 0 : index
    %c0_10 = arith.constant 0 : index
    %10 = vector.load %arg5[%c0_9, %c0_10] : memref<1x8xf32, #tpu.memory_space<vmem>>, vector<1x8xf32>
    %11 = vector.broadcast %10 : vector<1x8xf32> to vector<8x8xf32>
    %12 = arith.addf %9, %11 : vector<8x8xf32>
    %13 = arith.negf %12 : vector<8x8xf32>
    %14 = math.exp %13 : vector<8x8xf32>
    %cst_11 = arith.constant 1.000000e+00 : f32
    %15 = vector.broadcast %cst_11 : f32 to vector<8x8xf32>
    %16 = arith.addf %15, %14 : vector<8x8xf32>
    %17 = arith.divf %15, %16 : vector<8x8xf32>
    %c0_12 = arith.constant 0 : index
    %c0_13 = arith.constant 0 : index
    %18 = vector.load %arg6[%c0_12, %c0_13] : memref<8x8xf32, #tpu.memory_space<vmem>>, vector<8x8xf32>
    tpu.vector_store %arg6[%c0_12, %c0_13], %17 {strides = array<i32>} : memref<8x8xf32, #tpu.memory_space<vmem>>, vector<8x8xf32>,
    return
  }
  func.func @transform_0(%arg0: i32) -> (i32, i32) {
    %c0_i32 = arith.constant 0 : i32
    %c0_i32_0 = arith.constant 0 : i32
    return %arg0, %c0_i32 : i32, i32
  }
  func.func @transform_1(%arg0: i32) -> (i32, i32) {
    %c0_i32 = arith.constant 0 : i32
    %c0_i32_0 = arith.constant 0 : i32
    %c0_i32_1 = arith.constant 0 : i32
    return %c0_i32, %c0_i32_0 : i32, i32
  }
  func.func @transform_2(%arg0: i32) -> (i32, i32) {
    %c0_i32 = arith.constant 0 : i32
    %c0_i32_0 = arith.constant 0 : i32
    %c0_i32_1 = arith.constant 0 : i32
    return %c0_i32, %c0_i32_0 : i32, i32
  }
  func.func @transform_3(%arg0: i32) -> (i32, i32) {
    %c0_i32 = arith.constant 0 : i32
    %c0_i32_0 = arith.constant 0 : i32
    %c0_i32_1 = arith.constant 0 : i32
    return %c0_i32, %c0_i32_0 : i32, i32
  }
  func.func @transform_4(%arg0: i32) -> (i32, i32) {
    %c0_i32 = arith.constant 0 : i32
    %c0_i32_0 = arith.constant 0 : i32
    %c0_i32_1 = arith.constant 0 : i32
    return %c0_i32, %c0_i32_0 : i32, i32
  }
  func.func @transform_5(%arg0: i32) -> (i32, i32) {
    %c0_i32 = arith.constant 0 : i32
    %c0_i32_0 = arith.constant 0 : i32
    return %arg0, %c0_i32 : i32, i32
  }
}

</mosaic_0001>

<llo_original>
// kernel: actor_forward.1
$region0: #{actor_forward.1}
  #allocation0 [shape = 'u32[]', space=smem, size = 0x4, offset = 0x4, fixed_abs, tag = 'smem constant byte address 0x4 - core index']
  #allocation1 [shape = 'u32[72,128]{1,0:T(1,128)}', space=vmem, size = 0x9000, scoped, tag = 'internal scratch']
  %s0 = inlined_call_operand.vmem [shape: f32[2,32], index: 0, kind: input, shape index: {}]
  %s1 = inlined_call_operand.vmem [shape: f32[32,128], index: 1, kind: input, shape index: {}]
  %s2 = inlined_call_operand.vmem [shape: f32[1,128], index: 2, kind: input, shape index: {}]
  %s3 = inlined_call_operand.vmem [shape: f32[128,8], index: 3, kind: input, shape index: {}]
  %s4 = inlined_call_operand.vmem [shape: f32[1,8], index: 4, kind: input, shape index: {}]
  %s5 = inlined_call_operand.hbm [shape: f32[2,8], index: 5, kind: output, shape index: {}]
  %s6 = sld [smem:[#allocation0]]
  $region30: #{actor_forward.1} parent=0
    _
  %s8 = ssub.s32 1, %s6
  %s9 = scalar_select 0, %s8, %s6
  $region1: #{actor_forward.1} parent=0
    #allocation2 [shape = 'u8[4096]{0}', space=vmem, size = 0x1000, scoped, tag = 'output window, operand 0, single buffered']
    #allocation3 [shape = 's32[1]{0}', space=sflag, size = 0x4, scoped, tag = 'scoped memory for actor_forward.1']
    %10 = vsyncpa [#allocation3], 0
    // Predicated region
    $region2: #{actor_forward.1} parent=1 // pred_check
      _
    $region3: #{actor_forward.1} parent=1 // pred_check_branch
      %12 = sbr.rel (0) target = $region5
    $region4: #{actor_forward.1} parent=1 // pred_region
      _
    $region5: #{actor_forward.1} parent=1 // pred_fallthru
      _
    // Predicated region
    $region6: #{actor_forward.1} parent=1 // pred_check
      _
    $region7: #{actor_forward.1} parent=1 // pred_check_branch
      %14 = sbr.rel (0) target = $region9
    $region8: #{actor_forward.1} parent=1 // pred_region
      _
    $region9: #{actor_forward.1} parent=1 // pred_fallthru
      _
    // Predicated region
    $region10: #{actor_forward.1} parent=1 // pred_check
      _
    $region11: #{actor_forward.1} parent=1 // pred_check_branch
      %16 = sbr.rel (0) target = $region13
    $region12: #{actor_forward.1} parent=1 // pred_region
      _
    $region13: #{actor_forward.1} parent=1 // pred_fallthru
      _
    // Predicated region
    $region14: #{actor_forward.1} parent=1 // pred_check
      _
    $region15: #{actor_forward.1} parent=1 // pred_check_branch
      %18 = sbr.rel (0) target = $region17
    $region16: #{actor_forward.1} parent=1 // pred_region
      _
    $region17: #{actor_forward.1} parent=1 // pred_fallthru
      _
    // Predicated region
    $region18: #{actor_forward.1} parent=1 // pred_check
      _
    $region19: #{actor_forward.1} parent=1 // pred_check_branch
      %20 = sbr.rel (0) target = $region21
    $region20: #{actor_forward.1} parent=1 // pred_region
      _
    $region21: #{actor_forward.1} parent=1 // pred_fallthru
      _
    %v21 = vld [vmem:[%s0] sm:$0xff]
    %v22 = vld [vmem:[%s1] sm:$0xff]
    %v23 = vld [vmem:[%s1 + $0x8] sm:$0xff]
    %v24 = vld [vmem:[%s1 + $0x10] sm:$0xff]
    %v25 = vld [vmem:[%s1 + $0x18] sm:$0xff]
    %v26 = vld [vmem:[%s2] sm:$0x1]
    %v28 = vperm.slane %v26, 0
    %vm30 = vcmask 261120
    %v32 = vsel %vm30, %v21, 0
    %34 = vmatpush.msra.mxu0 0.0
    %35 = vmatpush.msra.mxu0 0.0
    %36 = vmatpush.msra.mxu0 0.0
    %37 = vmatpush.msra.mxu0 0.0
    %38 = vmatpush.msra.mxu0 0.0
    %39 = vmatpush.msra.mxu0 0.0
    %40 = vmatpush.msra.mxu0 0.0
    %41 = vmatpush.msra.mxu0 0.0
    %42 = vmatpush.msra.mxu0 0.0
    %43 = vmatpush.msra.mxu0 0.0
    %44 = vmatpush.msra.mxu0 0.0
    %45 = vmatpush.msra.mxu0 0.0
    %46 = vmatpush.msra.mxu0 %v25
    %47 = vmatpush.msra.mxu0 %v24
    %48 = vmatpush.msra.mxu0 %v23
    %49 = vmatpush.msra.mxu0 %v22
    %50 = vmatmul.f32.gmra.mxu0 %v32
    %v51 = vpop.f32.mrf.mxu0
    %v52 = vadd.f32 %v28, %v51
    %53 = vdwg.mxu0
    %v54 = vmax.f32 %v52, 0.0
    %v55 = vld [vmem:[%s3] sm:$0xff]
    %v56 = vld [vmem:[%s3 + $0x8] sm:$0xff]
    %v57 = vld [vmem:[%s3 + $0x10] sm:$0xff]
    %v58 = vld [vmem:[%s3 + $0x18] sm:$0xff]
    %v59 = vld [vmem:[%s3 + $0x20] sm:$0xff]
    %v60 = vld [vmem:[%s3 + $0x28] sm:$0xff]
    %v61 = vld [vmem:[%s3 + $0x30] sm:$0xff]
    %v62 = vld [vmem:[%s3 + $0x38] sm:$0xff]
    %v63 = vld [vmem:[%s3 + $0x40] sm:$0xff]
    %v64 = vld [vmem:[%s3 + $0x48] sm:$0xff]
    %v65 = vld [vmem:[%s3 + $0x50] sm:$0xff]
    %v66 = vld [vmem:[%s3 + $0x58] sm:$0xff]
    %v67 = vld [vmem:[%s3 + $0x60] sm:$0xff]
    %v68 = vld [vmem:[%s3 + $0x68] sm:$0xff]
    %v69 = vld [vmem:[%s3 + $0x70] sm:$0xff]
    %v70 = vld [vmem:[%s3 + $0x78] sm:$0xff]
    %v71 = vld [vmem:[%s4] sm:$0x1]
    %v73 = vperm.slane %v71, 0
    %75 = vmatpush.msra.mxu0 %v70
    %76 = vmatpush.msra.mxu0 %v69
    %77 = vmatpush.msra.mxu0 %v68
    %78 = vmatpush.msra.mxu0 %v67
    %79 = vmatpush.msra.mxu0 %v66
    %80 = vmatpush.msra.mxu0 %v65
    %81 = vmatpush.msra.mxu0 %v64
    %82 = vmatpush.msra.mxu0 %v63
    %83 = vmatpush.msra.mxu0 %v62
    %84 = vmatpush.msra.mxu0 %v61
    %85 = vmatpush.msra.mxu0 %v60
    %86 = vmatpush.msra.mxu0 %v59
    %87 = vmatpush.msra.mxu0 %v58
    %88 = vmatpush.msra.mxu0 %v57
    %89 = vmatpush.msra.mxu0 %v56
    %90 = vmatpush.msra.mxu0 %v55
    %91 = vmatmul.f32.gmra.mxu0 %v54
    %v92 = vpop.f32.mrf.mxu0
    %v93 = vadd.f32 %v73, %v92
    %94 = vdwg.mxu0
    %v95 = vxor.u32 %v93, 2147483648
    %v96 = vmul.f32 %v95, 1.442695
    %v97 = vpow.pop %v96
    %v98 = vadd.f32 %v97, 1.0
    %v99 = vrcp.pop %v98
    %v100 = vmul.f32 %v98, %v99
    %v101 = vsub.f32 1.0, %v100
    %v102 = vmul.f32 %v99, %v101
    %v103 = vadd.f32 %v99, %v102
    %vm104 = vweird.f32 %v98
    %vm105 = vweird.f32 %v99
    %vm106 = vmor %vm104, %vm105
    %v107 = vsel %vm106, %v99, %v103
    %v108 = vand.u32 2147483647, %v98
    %vm109 = vcmp.eq.f32.partialorder %v108, 8.507059e+37
    %v110 = vand.u32 %v98, 2147483648
    %v111 = vor.u32 1.1754944e-38, %v110
    %v112 = vsel %vm109, %v111, %v107
    %v113 = vmul.f32 1.0, %v112
    %vm114 = vcmask 64512
    %115 = vst.msk [vmem:[#allocation2] sm:$0xff] %vm114, %v113
    // Predicated region
    $region22: #{actor_forward.1} parent=1 // pred_check
      _
    $region23: #{actor_forward.1} parent=1 // pred_check_branch
      %117 = sbr.rel (0) target = $region25
    $region24: #{actor_forward.1} parent=1 // pred_region
      %119 = vsyncadd [#allocation3], 96
      %s120 = sshll.u32 [#allocation2], 4
      %s121 = int_to_ptr.vmem [resolvable:$true] %s120
      %s122 = sshll.u32 %s5, 4
      %s123 = int_to_ptr.hbm [resolvable:$true] %s122
      %128 = dma.vmem_to_hbm [thread:$0]  %s121, 32, %s123, [#allocation3], 32, 32, 2
    $region25: #{actor_forward.1} parent=1 // pred_fallthru
      _
    // Predicated region
    $region26: #{actor_forward.1} parent=1 // pred_check
      _
    $region27: #{actor_forward.1} parent=1 // pred_check_branch
      %130 = sbr.rel (0) target = $region29
    $region28: #{actor_forward.1} parent=1 // pred_region
      %132 = dma.done [#allocation3], 128
    $region29: #{actor_forward.1} parent=1 // pred_fallthru
      _
    %133 = vsyncpa [#allocation3], 1

</llo_original>
